<compile_context>
chip_gen: v7x
topology: tpu7x:2x2x1
jax: 0.10.0
libtpu: 0.0.40
codegen_flags: <defaults>
</compile_context>

<pallas_src>
import jax
import jax.numpy as jnp
from jax.experimental import pallas as pl
from jax.experimental.pallas import tpu as pltpu


_TARGET_BLOCK_BYTES = 4 * 1024 * 1024     # ~4 MiB x-block per grid step
_VMEM_LIMIT_BYTES = 32 * 1024 * 1024      # raises v5e's 16 MiB scoped default


def _sa_mul_kernel(x_ref, e_ref, o_ref):
    # x: (tb, C, tl), e: (tb, 1 or C, tl) -> channel broadcast on the VPU.
    o_ref[...] = x_ref[...] * e_ref[...]


def _sa_layer_impl(x, error):
    """SALayer.forward: tmp = x * error (error broadcastable against x).

    In FGNetOC x is (B, num_feat, H, W, 2) and error is the SA mask
    (B, 1, H, W, 1); the channel broadcast is done inside the kernel.
    """
    assert error.ndim == x.ndim, "error must have the same rank as x"
    B, C = x.shape[:2]
    rest = x.shape[2:]

    err_c = error.shape[1]
    if err_c not in (1, C):
        err_c = C
    # Cast the *small* mask, then broadcast every axis except channel in the
    # wrapper (for FGNetOC this is only the trailing complex dim: <= 1/C of x).
    error = jnp.broadcast_to(error.astype(x.dtype), (B, err_c) + rest)

    L = 1
    for d in rest:
        L *= d
    x2 = x.reshape(B, C, L)          # zero-copy views, no extra HBM pass
    e2 = error.reshape(B, err_c, L)

    itemsize = x2.dtype.itemsize
    target_elems = max(_TARGET_BLOCK_BYTES // itemsize, 8 * 128)

    # --- batch tile: group small per-batch slabs into one block, but keep the
    #     grid >= 2 steps so a v7x megacore can use both TensorCores.
    if B == 1 or C * L * itemsize >= _TARGET_BLOCK_BYTES:
        tb = 1
    else:
        tb = max(1, min(pl.cdiv(B, 2), target_elems // (C * L)))

    # --- lane tile: full L if it fits the budget, else a multiple of 128
    #     (Pallas handles a ragged last block; no host padding needed).
    budget = max(128, target_elems // (tb * C))
    if L <= budget:
        tl = L
    else:
        tl = (budget // 128) * 128

    grid = (pl.cdiv(B, tb), pl.cdiv(L, tl))

    # Single-block grids idle one v7x TensorCore; split the lane axis if we can.
    if grid[0] * grid[1] == 1 and L >= 256:
        tl = pl.cdiv(pl.cdiv(L, 2), 128) * 128
        grid = (1, pl.cdiv(L, tl))

    out2 = pl.pallas_call(
        _sa_mul_kernel,
        out_shape=jax.ShapeDtypeStruct((B, C, L), x.dtype),
        grid=grid,
        in_specs=[
            pl.BlockSpec((tb, C, tl), lambda b, l: (b, 0, l)),
            # Mask block: channel extent 1 (or C when error is full-sized);
            # same index_map -> the small mask block is simply re-used across
            # the channel broadcast instead of being materialized in HBM.
            pl.BlockSpec((tb, err_c, tl), lambda b, l: (b, 0, l)),
        ],
        out_specs=pl.BlockSpec((tb, C, tl), lambda b, l: (b, 0, l)),
        compiler_params=pltpu.CompilerParams(
            dimension_semantics=("parallel", "parallel"),
            vmem_limit_bytes=_VMEM_LIMIT_BYTES,
        ),
    )(x2, e2)

    return out2.reshape(x.shape)


sa_layer = jax.jit(_sa_layer_impl)


if __name__ == "__main__":
    key = jax.random.PRNGKey(0)
    k1, k2, k3, k4, k5, k6 = jax.random.split(key, 6)

    # --- FGNetOC SALayer usage: x (B, num_feat, H, W, 2), SA mask (B,1,H,W,1)
    B, F, H, W, D = 2, 32, 16, 16, 2
    x = jax.random.normal(k1, (B, F, H, W, D), dtype=jnp.float32)
    err = jax.nn.sigmoid(jax.random.normal(k2, (B, 1, H, W, 1), dtype=jnp.float32))
    out = jax.block_until_ready(sa_layer(x, err))
    ref = x * err
    assert out.shape == ref.shape
    assert jnp.allclose(out, ref, atol=1e-6, rtol=1e-6)

    # --- same-shape path (no broadcast), matches the generic SALayer contract
    xs = jax.random.normal(k3, (2, 4, 16, 16), dtype=jnp.float32)
    es = jax.random.normal(k4, (2, 4, 16, 16), dtype=jnp.float32)
    outs = jax.block_until_ready(sa_layer(xs, es))
    assert jnp.allclose(outs, xs * es, atol=1e-6, rtol=1e-6)

    # --- larger batch + spatial size whose flattened length (18*18*2 = 648)
    #     is NOT a multiple of 128: exercised without any host-side padding.
    B2, F2, H2, W2, D2 = 4, 32, 18, 18, 2
    xb = jax.random.normal(k5, (B2, F2, H2, W2, D2), dtype=jnp.float32)
    eb = jax.random.uniform(k6, (B2, 1, H2, W2, 1), dtype=jnp.float32)
    outb = jax.block_until_ready(sa_layer(xb, eb))
    assert outb.shape == xb.shape
    assert jnp.allclose(outb, xb * eb, atol=1e-6, rtol=1e-6)

    print("KERNEL_OK")
</pallas_src>

<mosaic_0001>
module attributes {stable_mosaic.version = 11 : i64} {
  func.func @_sa_mul_kernel(%arg0: i32, %arg1: i32, %arg2: memref<1x32x512xf32, #tpu.memory_space<vmem>>, %arg3: memref<1x1x512xf32, #tpu.memory_space<vmem>>, %arg4: memref<1x32x512xf32, #tpu.memory_space<vmem>>) attributes {dimension_semantics = [#tpu.dimension_semantics<parallel>, #tpu.dimension_semantics<parallel>], iteration_bounds = array<i64: 2, 1>, scalar_prefetch = 0 : i64, scratch_operands = 0 : i64, tpu.core_type = #tpu.core_type<tc>, window_params = [{transform_indices = @transform_0, window_bounds = array<i64: 1, 32, 512>}, {transform_indices = @transform_1, window_bounds = array<i64: 1, 1, 512>}, {transform_indices = @transform_2, window_bounds = array<i64: 1, 32, 512>}]} {
    %c0 = arith.constant 0 : index
    %c0_0 = arith.constant 0 : index
    %c0_1 = arith.constant 0 : index
    %0 = vector.load %arg2[%c0, %c0_0, %c0_1] : memref<1x32x512xf32, #tpu.memory_space<vmem>>, vector<1x32x512xf32>
    %c0_2 = arith.constant 0 : index
    %c0_3 = arith.constant 0 : index
    %c0_4 = arith.constant 0 : index
    %1 = vector.load %arg3[%c0_2, %c0_3, %c0_4] : memref<1x1x512xf32, #tpu.memory_space<vmem>>, vector<1x1x512xf32>
    %2 = vector.broadcast %1 : vector<1x1x512xf32> to vector<1x32x512xf32>
    %3 = arith.mulf %0, %2 : vector<1x32x512xf32>
    %c0_5 = arith.constant 0 : index
    %c0_6 = arith.constant 0 : index
    %c0_7 = arith.constant 0 : index
    %4 = vector.load %arg4[%c0_5, %c0_6, %c0_7] : memref<1x32x512xf32, #tpu.memory_space<vmem>>, vector<1x32x512xf32>
    tpu.vector_store %arg4[%c0_5, %c0_6, %c0_7], %3 {strides = array<i32>} : memref<1x32x512xf32, #tpu.memory_space<vmem>>, vector<1x32x512xf32>,
    return
  }
  func.func @transform_0(%arg0: i32, %arg1: i32) -> (i32, i32, i32) {
    %c0_i32 = arith.constant 0 : i32
    %c0_i32_0 = arith.constant 0 : i32
    return %arg0, %c0_i32, %arg1 : i32, i32, i32
  }
  func.func @transform_1(%arg0: i32, %arg1: i32) -> (i32, i32, i32) {
    %c0_i32 = arith.constant 0 : i32
    %c0_i32_0 = arith.constant 0 : i32
    return %arg0, %c0_i32, %arg1 : i32, i32, i32
  }
  func.func @transform_2(%arg0: i32, %arg1: i32) -> (i32, i32, i32) {
    %c0_i32 = arith.constant 0 : i32
    %c0_i32_0 = arith.constant 0 : i32
    return %arg0, %c0_i32, %arg1 : i32, i32, i32
  }
}

</mosaic_0001>

<llo_original>
// kernel: _sa_layer_impl.1
$region0: #{_sa_layer_impl.1}
  #allocation0 [shape = 'u32[]', space=smem, size = 0x4, offset = 0x4, fixed_abs, tag = 'smem constant byte address 0x4 - core index']
  #allocation1 [shape = 'u32[144,128]{1,0:T(1,128)}', space=vmem, size = 0x12000, scoped, tag = 'internal scratch']
  %s0 = inlined_call_operand.vmem [shape: f32[2,32,512], index: 0, kind: input, shape index: {}]
  %s1 = inlined_call_operand.vmem [shape: f32[2,1,512], index: 1, kind: input, shape index: {}]
  %s2 = inlined_call_operand.vmem [shape: f32[2,32,512], index: 2, kind: output, shape index: {}]
  %s3 = sld [smem:[#allocation0]]
  $region41: #{_sa_layer_impl.1} parent=0
    _
  %s5 = ssub.s32 1, %s3
  %s6 = scalar_select 0, %s5, %s3
  loop: start=0, step=1, limit=4
  $region2: #{_sa_layer_impl.1} parent=0 // loop_pre_header
    _
  $region3: #{_sa_layer_impl.1} parent=0 // loop_header
    %s8 = sphi 0, %s12
    %p9 = scmp.ge.s32.totalorder %s8, 4
    %s15 = sphi 0, %s27
    %s16 = sphi 0, %s23
    %s17 = sphi 0, %s15
    %s18 = sphi 0, %s16
    %s19 = sphi 0, %s17
    %s20 = sphi 0, %s18
    %s32 = sphi 0, %s34
    %s35 = sphi 0, %s32
    %s36 = sphi 0, %s35
    %s52 = sphi 0, %s36
    %s60 = sphi 0, %s62
    %s63 = sphi 0, %s60
    %s64 = sphi 0, %s63
    %s80 = sphi 0, %s64
    %s88 = sphi 0, %s90
    %s91 = sphi 0, %s88
    %s92 = sphi 0, %s91
    %s108 = sphi 0, %s92
  $region4: #{_sa_layer_impl.1} parent=0 // loop_header_branch
    %11 = sbr.rel (%p9) target = $region8
  $region5: #{_sa_layer_impl.1} parent=0 // loop_body
    %s13 = ssub.s32 %s8, 1
    %s14 = ssub.s32 %s8, 2
    %s21 = sadd.s32 1, %s16
    %p22 = scmp.ge.s32.totalorder %s21, 1
    %s23 = scalar_select %p22, 0, %s21
    %s24 = sadd.s32 1, %s15
    %s25 = scalar_select %p22, %s24, %s15
    %p26 = scmp.ge.s32.totalorder %s25, 2
    %s27 = scalar_select %p26, 0, %s25
    %s28 = ssub.s32 %s15, %s27
    %s29 = ssub.s32 %s16, %s23
    %s30 = sor.u32 %s28, %s29
    %p31 = scmp.eq.s32.totalorder %s30, 0
    %s33 = sadd.s32 %s32, 1
    %s34 = scalar_select %p31, %s32, %s33
    %p37 = pneg %p31
    %p38 = scmp.eq.s32.totalorder %s8, 1
    %p39 = por %p37, %p38
    %p40 = scmp.ne.s32.totalorder %s32, %s35
    %p41 = scmp.eq.s32.totalorder %s8, 0
    %p42 = por %p40, %p41
    %p43 = scmp.ne.s32.totalorder %s32, %s35
    %p44 = scmp.eq.s32.totalorder %s13, 1
    %p45 = por %p43, %p44
    %p46 = scmp.ne.s32.totalorder %s35, %s36
    %p47 = scmp.eq.s32.totalorder %s13, 0
    %p48 = por %p46, %p47
    %p49 = scmp.ne.s32.totalorder %s35, %s36
    %p50 = scmp.eq.s32.totalorder %s14, 1
    %p51 = por %p49, %p50
    %p53 = scmp.ne.s32.totalorder %s36, %s52
    %p54 = scmp.eq.s32.totalorder %s14, 0
    %p55 = por %p53, %p54
    %s56 = ssub.s32 %s15, %s27
    %s57 = ssub.s32 %s16, %s23
    %s58 = sor.u32 %s56, %s57
    %p59 = scmp.eq.s32.totalorder %s58, 0
    %s61 = sadd.s32 %s60, 1
    %s62 = scalar_select %p59, %s60, %s61
    %p65 = pneg %p59
    %p66 = scmp.eq.s32.totalorder %s8, 1
    %p67 = por %p65, %p66
    %p68 = scmp.ne.s32.totalorder %s60, %s63
    %p69 = scmp.eq.s32.totalorder %s8, 0
    %p70 = por %p68, %p69
    %p71 = scmp.ne.s32.totalorder %s60, %s63
    %p72 = scmp.eq.s32.totalorder %s13, 1
    %p73 = por %p71, %p72
    %p74 = scmp.ne.s32.totalorder %s63, %s64
    %p75 = scmp.eq.s32.totalorder %s13, 0
    %p76 = por %p74, %p75
    %p77 = scmp.ne.s32.totalorder %s63, %s64
    %p78 = scmp.eq.s32.totalorder %s14, 1
    %p79 = por %p77, %p78
    %p81 = scmp.ne.s32.totalorder %s64, %s80
    %p82 = scmp.eq.s32.totalorder %s14, 0
    %p83 = por %p81, %p82
    %s84 = ssub.s32 %s15, %s27
    %s85 = ssub.s32 %s16, %s23
    %s86 = sor.u32 %s84, %s85
    %p87 = scmp.eq.s32.totalorder %s86, 0
    %s89 = sadd.s32 %s88, 1
    %s90 = scalar_select %p87, %s88, %s89
    %p93 = pneg %p87
    %p94 = scmp.eq.s32.totalorder %s8, 1
    %p95 = por %p93, %p94
    %p96 = scmp.ne.s32.totalorder %s88, %s91
    %p97 = scmp.eq.s32.totalorder %s8, 0
    %p98 = por %p96, %p97
    %p99 = scmp.ne.s32.totalorder %s88, %s91
    %p100 = scmp.eq.s32.totalorder %s13, 1
    %p101 = por %p99, %p100
    %p102 = scmp.ne.s32.totalorder %s91, %s92
    %p103 = scmp.eq.s32.totalorder %s13, 0
    %p104 = por %p102, %p103
    %p105 = scmp.ne.s32.totalorder %s91, %s92
    %p106 = scmp.eq.s32.totalorder %s14, 1
    %p107 = por %p105, %p106
    %p109 = scmp.ne.s32.totalorder %s92, %s108
    %p110 = scmp.eq.s32.totalorder %s14, 0
    %p111 = por %p109, %p110
    %p112 = scmp.le.s32.totalorder 1, %s8
    %p113 = scmp.lt.s32.totalorder %s8, 3
    %p114 = pnand %p112, %p113
    %p115 = pneg %p114
    // Predicated region
    $region9: #{_sa_layer_impl.1} parent=5 // pred_check
      _
    $region10: #{_sa_layer_impl.1} parent=5 // pred_check_branch
      %117 = sbr.rel (%p114) target = $region12
    $region11: #{_sa_layer_impl.1} parent=5 // pred_region
      %s118 = ssub.s32 %s8, 1
    $region12: #{_sa_layer_impl.1} parent=5 // pred_fallthru
      _
    %p119 = scmp.lt.s32.totalorder %s8, 2
    // Predicated region
    $region13: #{_sa_layer_impl.1} parent=5 // pred_check
      %p120 = pneg %p119
    $region14: #{_sa_layer_impl.1} parent=5 // pred_check_branch
      %122 = sbr.rel (%p120) target = $region16
    $region15: #{_sa_layer_impl.1} parent=5 // pred_region
      // Predicated region
      $region17: #{_sa_layer_impl.1} parent=15 // pred_check
        %p123 = pneg %p42
      $region18: #{_sa_layer_impl.1} parent=15 // pred_check_branch
        %125 = sbr.rel (%p123) target = $region20
      $region19: #{_sa_layer_impl.1} parent=15 // pred_region
        %s126 = smul.u32 4, %s16
        %p127 = scmp.lt.s32.totalorder %s15, 1
        %s128 = scalar_select %p127, %s15, 1
        %p129 = scmp.lt.s32.totalorder %s126, 3
        %s130 = scalar_select %p129, %s126, 3
        %s131 = smul.addr %s128, 16
        %s132 = sadd.s32 %s130, %s131
        %s133 = smul.addr %s132, 8
        %s134 = scalar_lea.vmem %s0, %s133
        %s135 = smul.u32 4, %s16
      $region20: #{_sa_layer_impl.1} parent=15 // pred_fallthru
        _
      // Predicated region
      $region21: #{_sa_layer_impl.1} parent=15 // pred_check
        %p136 = pneg %p70
      $region22: #{_sa_layer_impl.1} parent=15 // pred_check_branch
        %138 = sbr.rel (%p136) target = $region24
      $region23: #{_sa_layer_impl.1} parent=15 // pred_region
        %s139 = smul.u32 4, %s16
        %p140 = scmp.lt.s32.totalorder %s15, 1
        %s141 = scalar_select %p140, %s15, 1
        %p142 = scmp.lt.s32.totalorder %s139, 3
        %s143 = scalar_select %p142, %s139, 3
        %s144 = smul.addr %s141, 4
        %s145 = sadd.s32 %s143, %s144
        %s146 = scalar_lea.vmem %s1, %s145
        %s147 = smul.u32 4, %s16
      $region24: #{_sa_layer_impl.1} parent=15 // pred_fallthru
        _
    $region16: #{_sa_layer_impl.1} parent=5 // pred_fallthru
      _
    %p148 = scmp.le.s32.totalorder 1, %s8
    %p149 = scmp.lt.s32.totalorder %s8, 3
    %p150 = pnand %p148, %p149
    %p151 = pneg %p150
    // Predicated region
    $region25: #{_sa_layer_impl.1} parent=5 // pred_check
      _
    $region26: #{_sa_layer_impl.1} parent=5 // pred_check_branch
      %153 = sbr.rel (%p150) target = $region28
    $region27: #{_sa_layer_impl.1} parent=5 // pred_region
      %s154 = ssub.s32 %s8, 1
      %s155 = smul.u32 4, %s18
      %p156 = scmp.lt.s32.totalorder %s17, 1
      %s157 = scalar_select %p156, %s17, 1
      %p158 = scmp.lt.s32.totalorder %s155, 3
      %s159 = scalar_select %p158, %s155, 3
      %s160 = smul.addr %s157, 16
      %s161 = sadd.s32 %s159, %s160
      %s162 = smul.addr %s161, 8
      %s163 = scalar_lea.vmem %s0, %s162
      %p164 = pneg %p48
      %p165 = pneg %p45
      %s166 = smul.u32 4, %s18
      %p167 = scmp.lt.s32.totalorder %s17, 1
      %s168 = scalar_select %p167, %s17, 1
      %p169 = scmp.lt.s32.totalorder %s166, 3
      %s170 = scalar_select %p169, %s166, 3
      %s171 = smul.addr %s168, 4
      %s172 = sadd.s32 %s170, %s171
      %s173 = scalar_lea.vmem %s1, %s172
      %p174 = pneg %p76
      %p175 = pneg %p73
      %p176 = pneg %p104
      %p177 = pneg %p101
      %s178 = smul.u32 4, %s18
      %p179 = scmp.lt.s32.totalorder %s17, 1
      %s180 = scalar_select %p179, %s17, 1
      %p181 = scmp.lt.s32.totalorder %s178, 3
      %s182 = scalar_select %p181, %s178, 3
      %s183 = smul.addr %s180, 16
      %s184 = sadd.s32 %s182, %s183
      %s185 = smul.addr %s184, 8
      %s186 = scalar_lea.vmem %s2, %s185
      %s187 = smul.u32 4, %s18
      %p188 = scmp.lt.s32.totalorder %s17, 1
      %s189 = scalar_select %p188, %s17, 1
      %p190 = scmp.lt.s32.totalorder %s187, 3
      %s191 = scalar_select %p190, %s187, 3
      %s192 = smul.addr %s189, 16
      %s193 = sadd.s32 %s191, %s192
      %s194 = smul.addr %s193, 8
      %s195 = scalar_lea.vmem %s0, %s194
      %s196 = smul.u32 4, %s18
      %s197 = smul.u32 4, %s18
      %p198 = scmp.lt.s32.totalorder %s17, 1
      %s199 = scalar_select %p198, %s17, 1
      %p200 = scmp.lt.s32.totalorder %s197, 3
      %s201 = scalar_select %p200, %s197, 3
      %s202 = smul.addr %s199, 4
      %s203 = sadd.s32 %s201, %s202
      %s204 = scalar_lea.vmem %s1, %s203
      %s205 = smul.u32 4, %s18
      %s206 = smul.u32 4, %s18
      %p207 = scmp.lt.s32.totalorder %s17, 1
      %s208 = scalar_select %p207, %s17, 1
      %p209 = scmp.lt.s32.totalorder %s206, 3
      %s210 = scalar_select %p209, %s206, 3
      %s211 = smul.addr %s208, 16
      %s212 = sadd.s32 %s210, %s211
      %s213 = smul.addr %s212, 8
      %s214 = scalar_lea.vmem %s2, %s213
      %s215 = smul.u32 4, %s18
      %v216 = vld [vmem:[%s195] sm:$0xff]
      %v217 = vld [vmem:[%s195 + $0x8] sm:$0xff]
      %v218 = vld [vmem:[%s195 + $0x10] sm:$0xff]
      %v219 = vld [vmem:[%s195 + $0x18] sm:$0xff]
      %v220 = vld [vmem:[%s195 + $0x20] sm:$0xff]
      %v221 = vld [vmem:[%s195 + $0x28] sm:$0xff]
      %v222 = vld [vmem:[%s195 + $0x30] sm:$0xff]
      %v223 = vld [vmem:[%s195 + $0x38] sm:$0xff]
      %v224 = vld [vmem:[%s195 + $0x40] sm:$0xff]
      %v225 = vld [vmem:[%s195 + $0x48] sm:$0xff]
      %v226 = vld [vmem:[%s195 + $0x50] sm:$0xff]
      %v227 = vld [vmem:[%s195 + $0x58] sm:$0xff]
      %v228 = vld [vmem:[%s195 + $0x60] sm:$0xff]
      %v229 = vld [vmem:[%s195 + $0x68] sm:$0xff]
      %v230 = vld [vmem:[%s195 + $0x70] sm:$0xff]
      %v231 = vld [vmem:[%s195 + $0x78] sm:$0xff]
      %v232 = vld [vmem:[%s204] sm:$0xf]
      %v234 = vlaneseq
      %v235 = vshrl.u32 %v234, 7
      %v236 = vsub.s32 0, %v235
      %v237 = vrot.slane %v232, %v236
      %v238 = vlaneseq
      %v239 = vshrl.u32 %v238, 7
      %v240 = vsub.s32 1, %v239
      %v241 = vrot.slane %v232, %v240
      %v242 = vlaneseq
      %v243 = vshrl.u32 %v242, 7
      %v244 = vsub.s32 2, %v243
      %v245 = vrot.slane %v232, %v244
      %v246 = vlaneseq
      %v247 = vshrl.u32 %v246, 7
      %v248 = vsub.s32 3, %v247
      %v249 = vrot.slane %v232, %v248
      %v254 = vmul.f32 %v216, %v237
      %v255 = vmul.f32 %v217, %v241
      %v256 = vmul.f32 %v218, %v245
      %v257 = vmul.f32 %v219, %v249
      %v258 = vmul.f32 %v220, %v237
      %v259 = vmul.f32 %v221, %v241
      %v260 = vmul.f32 %v222, %v245
      %v261 = vmul.f32 %v223, %v249
      %v262 = vmul.f32 %v224, %v237
      %v263 = vmul.f32 %v225, %v241
      %v264 = vmul.f32 %v226, %v245
      %v265 = vmul.f32 %v227, %v249
      %v266 = vmul.f32 %v228, %v237
      %v267 = vmul.f32 %v229, %v241
      %v268 = vmul.f32 %v230, %v245
      %v269 = vmul.f32 %v231, %v249
      %270 = vst [vmem:[%s214] sm:$0xff] %v254
      %271 = vst [vmem:[%s214 + $0x8] sm:$0xff] %v255
      %272 = vst [vmem:[%s214 + $0x10] sm:$0xff] %v256
      %273 = vst [vmem:[%s214 + $0x18] sm:$0xff] %v257
      %274 = vst [vmem:[%s214 + $0x20] sm:$0xff] %v258
      %275 = vst [vmem:[%s214 + $0x28] sm:$0xff] %v259
      %276 = vst [vmem:[%s214 + $0x30] sm:$0xff] %v260
      %277 = vst [vmem:[%s214 + $0x38] sm:$0xff] %v261
      %278 = vst [vmem:[%s214 + $0x40] sm:$0xff] %v262
      %279 = vst [vmem:[%s214 + $0x48] sm:$0xff] %v263
      %280 = vst [vmem:[%s214 + $0x50] sm:$0xff] %v264
      %281 = vst [vmem:[%s214 + $0x58] sm:$0xff] %v265
      %282 = vst [vmem:[%s214 + $0x60] sm:$0xff] %v266
      %283 = vst [vmem:[%s214 + $0x68] sm:$0xff] %v267
      %284 = vst [vmem:[%s214 + $0x70] sm:$0xff] %v268
      %285 = vst [vmem:[%s214 + $0x78] sm:$0xff] %v269
      %s286 = smul.u32 4, %s18
      %p287 = scmp.lt.s32.totalorder %s17, 1
      %s288 = scalar_select %p287, %s17, 1
      %p289 = scmp.lt.s32.totalorder %s286, 3
      %s290 = scalar_select %p289, %s286, 3
      %s291 = smul.addr %s288, 16
      %s292 = sadd.s32 %s290, %s291
      %s293 = smul.addr %s292, 8
      %s294 = scalar_lea.vmem %s2, %s293
      // Predicated region
      $region29: #{_sa_layer_impl.1} parent=27 // pred_check
        %p295 = pneg %p101
      $region30: #{_sa_layer_impl.1} parent=27 // pred_check_branch
        %297 = sbr.rel (%p295) target = $region32
      $region31: #{_sa_layer_impl.1} parent=27 // pred_region
        %s298 = smul.u32 4, %s18
      $region32: #{_sa_layer_impl.1} parent=27 // pred_fallthru
        _
    $region28: #{_sa_layer_impl.1} parent=5 // pred_fallthru
      _
    %p299 = scmp.le.s32.totalorder 2, %s8
    // Predicated region
    $region33: #{_sa_layer_impl.1} parent=5 // pred_check
      %p300 = pneg %p299
    $region34: #{_sa_layer_impl.1} parent=5 // pred_check_branch
      %302 = sbr.rel (%p300) target = $region36
    $region35: #{_sa_layer_impl.1} parent=5 // pred_region
      %s303 = ssub.s32 %s8, 2
      // Predicated region
      $region37: #{_sa_layer_impl.1} parent=35 // pred_check
        %p304 = pneg %p107
      $region38: #{_sa_layer_impl.1} parent=35 // pred_check_branch
        %306 = sbr.rel (%p304) target = $region40
      $region39: #{_sa_layer_impl.1} parent=35 // pred_region
        %s307 = smul.u32 4, %s20
        %p308 = scmp.lt.s32.totalorder %s19, 1
        %s309 = scalar_select %p308, %s19, 1
        %p310 = scmp.lt.s32.totalorder %s307, 3
        %s311 = scalar_select %p310, %s307, 3
        %s312 = smul.addr %s309, 16
        %s313 = sadd.s32 %s311, %s312
        %s314 = smul.addr %s313, 8
        %s315 = scalar_lea.vmem %s2, %s314
      $region40: #{_sa_layer_impl.1} parent=35 // pred_fallthru
        _
    $region36: #{_sa_layer_impl.1} parent=5 // pred_fallthru
      _
  $region6: #{_sa_layer_impl.1} parent=0 // loop_footer
    %s12 = sadd.s32 1, %s8
  $region7: #{_sa_layer_impl.1} parent=0 // loop_footer_branch
    %7 = sbr.rel target = $region3
  $region8: #{_sa_layer_impl.1} parent=0 // loop_exit
    _

</llo_original>
